<compile_context>
chip_gen: v7x
topology: tpu7x:2x2x1
jax: 0.10.0
libtpu: 0.0.40
codegen_flags: <defaults>
</compile_context>

<pallas_src>
from functools import partial

import numpy as np
import jax
import jax.numpy as jnp
from jax.experimental import pallas as pl
from jax.experimental.pallas import tpu as pltpu


# ----------------------------------------------------------------------------- kernels

def _shared_dropout_bf_kernel(x_ref, m_ref, o_ref):
    # x_ref / o_ref: VMEM [1, T_TILE, H];  m_ref: VMEM [1, 1, H]
    # Multiply in the promoted (f32) dtype, cast only the product.
    o_ref[...] = (x_ref[...] * m_ref[...]).astype(o_ref.dtype)


def _shared_dropout_tb_kernel(x_ref, m_ref, o_ref):
    # x_ref / o_ref: VMEM [T_TILE, B, H];  m_ref: VMEM [B, H]
    o_ref[...] = (x_ref[...] * m_ref[...][None, :, :]).astype(o_ref.dtype)


# ----------------------------------------------------------------------------- helpers

def _choose_tile(total, bytes_per_step, target_bytes=2 << 20, align=8):
    """Largest tile (multiple of `align`, capped at `total`) with ~target_bytes per block."""
    if bytes_per_step <= 0:
        return total
    t = max(int(target_bytes // bytes_per_step), 1)
    if t >= total:
        return total
    t = max((t // align) * align, align)
    return min(t, total)


# ----------------------------------------------------------------------------- wrapper

def shared_dropout(x, key, p=0.5, batch_first=True, training=True):
    """JAX/Pallas equivalent of SharedDropout.forward (functional: returns a new array)."""
    if not training or p == 0.0:
        return x

    keep = 1.0 - p
    inv_keep = 1.0 / keep
    orig_shape = x.shape
    itemsize = np.dtype(x.dtype).itemsize

    if batch_first:
        # x: [B, T, ...] ; mask drawn from x[:, 0] and shared across the T axis.
        B, T = x.shape[0], x.shape[1]
        H = int(np.prod(x.shape[2:])) if x.ndim > 2 else 1
        x3 = x.reshape(B, T, H)
        # Per-(batch, feature) mask, scaled by 1/(1-p), kept in f32.
        mask = (jax.random.bernoulli(key, keep, (B, H)).astype(jnp.float32)
                * jnp.float32(inv_keep)).reshape(B, 1, H)

        t_tile = _choose_tile(T, H * itemsize, align=8)
        grid = (B, pl.cdiv(T, t_tile))

        out = pl.pallas_call(
            _shared_dropout_bf_kernel,
            out_shape=jax.ShapeDtypeStruct((B, T, H), x3.dtype),
            grid=grid,
            in_specs=[
                pl.BlockSpec((1, t_tile, H), lambda b, t: (b, t, 0)),
                pl.BlockSpec((1, 1, H), lambda b, t: (b, 0, 0)),
            ],
            out_specs=pl.BlockSpec((1, t_tile, H), lambda b, t: (b, t, 0)),
            compiler_params=pltpu.CompilerParams(
                dimension_semantics=("parallel", "parallel")),
        )(x3, mask)
        return out.reshape(orig_shape)

    # batch_first=False: x: [T, B, ...]; mask drawn from x[0], shared across the leading T axis.
    T, B = x.shape[0], x.shape[1]
    H = int(np.prod(x.shape[2:])) if x.ndim > 2 else 1
    x3 = x.reshape(T, B, H)
    mask = (jax.random.bernoulli(key, keep, (B, H)).astype(jnp.float32)
            * jnp.float32(inv_keep))

    t_tile = _choose_tile(T, B * H * itemsize, align=1)
    grid = (pl.cdiv(T, t_tile),)

    out = pl.pallas_call(
        _shared_dropout_tb_kernel,
        out_shape=jax.ShapeDtypeStruct((T, B, H), x3.dtype),
        grid=grid,
        in_specs=[
            pl.BlockSpec((t_tile, B, H), lambda t: (t, 0, 0)),
            pl.BlockSpec((B, H), lambda t: (0, 0)),
        ],
        out_specs=pl.BlockSpec((t_tile, B, H), lambda t: (t, 0, 0)),
        compiler_params=pltpu.CompilerParams(
            dimension_semantics=("parallel",)),
    )(x3, mask)
    return out.reshape(orig_shape)


# ----------------------------------------------------------------------------- main

if __name__ == "__main__":
    B, T, H = 2, 8, 32
    p = 0.5
    scale = 1.0 / (1.0 - p)

    root = jax.random.PRNGKey(0)
    kx, kmask, kx2, kmask2 = jax.random.split(root, 4)

    # Strictly positive inputs so out / x recovers the applied mask exactly.
    x = jax.random.uniform(kx, (B, T, H), jnp.float32, minval=0.5, maxval=1.5)

    fwd = jax.jit(partial(shared_dropout, p=p, batch_first=True, training=True))
    out = jax.block_until_ready(fwd(x, kmask))
    assert out.shape == x.shape

    x_np, out_np = np.asarray(x), np.asarray(out)
    ratio = out_np / x_np                                      # implied mask
    # mask is shared across the sequence dimension
    assert np.allclose(ratio, ratio[:, :1, :], atol=1e-5)
    # mask values are exactly {0, 1/(1-p)}
    assert np.all(np.isclose(ratio, 0.0, atol=1e-5) | np.isclose(ratio, scale, atol=1e-4))
    # with p=0.5 and B*H=64 draws, both outcomes occur (prob of failure ~2^-63)
    assert (np.isclose(ratio, 0.0)).any() and (np.isclose(ratio, scale)).any()

    # eval mode is the identity (no kernel launched)
    out_eval = shared_dropout(x, kmask, p=p, training=False)
    assert np.allclose(np.asarray(out_eval), x_np)

    # batch_first=False path: [T, B, H] handled natively (no transposes);
    # mask drawn from x[0] and shared across the leading time axis.
    x_tb = jax.random.uniform(kx2, (T, B, H), jnp.float32, minval=0.5, maxval=1.5)
    out_tb = jax.block_until_ready(
        shared_dropout(x_tb, kmask2, p=p, batch_first=False, training=True))
    r_tb = np.asarray(out_tb) / np.asarray(x_tb)
    assert np.allclose(r_tb, r_tb[:1], atol=1e-5)
    assert np.all(np.isclose(r_tb, 0.0, atol=1e-5) | np.isclose(r_tb, scale, atol=1e-4))

    # TODO(synk): torch's in-place `x *= mask` is returned as a new array (functional JAX).
    print("KERNEL_OK")
</pallas_src>

<mosaic_0001>
module attributes {stable_mosaic.version = 11 : i64} {
  func.func @_shared_dropout_bf_kernel(%arg0: i32, %arg1: i32, %arg2: memref<1x8x32xf32, #tpu.memory_space<vmem>>, %arg3: memref<1x1x32xf32, #tpu.memory_space<vmem>>, %arg4: memref<1x8x32xf32, #tpu.memory_space<vmem>>) attributes {dimension_semantics = [#tpu.dimension_semantics<parallel>, #tpu.dimension_semantics<parallel>], iteration_bounds = array<i64: 2, 1>, scalar_prefetch = 0 : i64, scratch_operands = 0 : i64, tpu.core_type = #tpu.core_type<tc>, window_params = [{transform_indices = @transform_0, window_bounds = array<i64: 1, 8, 32>}, {transform_indices = @transform_1, window_bounds = array<i64: 1, 1, 32>}, {transform_indices = @transform_2, window_bounds = array<i64: 1, 8, 32>}]} {
    %c0 = arith.constant 0 : index
    %c0_0 = arith.constant 0 : index
    %c0_1 = arith.constant 0 : index
    %0 = vector.load %arg2[%c0, %c0_0, %c0_1] : memref<1x8x32xf32, #tpu.memory_space<vmem>>, vector<1x8x32xf32>
    %c0_2 = arith.constant 0 : index
    %c0_3 = arith.constant 0 : index
    %c0_4 = arith.constant 0 : index
    %1 = vector.load %arg3[%c0_2, %c0_3, %c0_4] : memref<1x1x32xf32, #tpu.memory_space<vmem>>, vector<1x1x32xf32>
    %2 = vector.broadcast %1 : vector<1x1x32xf32> to vector<1x8x32xf32>
    %3 = arith.mulf %0, %2 : vector<1x8x32xf32>
    %c0_5 = arith.constant 0 : index
    %c0_6 = arith.constant 0 : index
    %c0_7 = arith.constant 0 : index
    %4 = vector.load %arg4[%c0_5, %c0_6, %c0_7] : memref<1x8x32xf32, #tpu.memory_space<vmem>>, vector<1x8x32xf32>
    tpu.vector_store %arg4[%c0_5, %c0_6, %c0_7], %3 {strides = array<i32>} : memref<1x8x32xf32, #tpu.memory_space<vmem>>, vector<1x8x32xf32>,
    return
  }
  func.func @transform_0(%arg0: i32, %arg1: i32) -> (i32, i32, i32) {
    %c0_i32 = arith.constant 0 : i32
    %c0_i32_0 = arith.constant 0 : i32
    return %arg0, %arg1, %c0_i32 : i32, i32, i32
  }
  func.func @transform_1(%arg0: i32, %arg1: i32) -> (i32, i32, i32) {
    %c0_i32 = arith.constant 0 : i32
    %c0_i32_0 = arith.constant 0 : i32
    %c0_i32_1 = arith.constant 0 : i32
    return %arg0, %c0_i32, %c0_i32_0 : i32, i32, i32
  }
  func.func @transform_2(%arg0: i32, %arg1: i32) -> (i32, i32, i32) {
    %c0_i32 = arith.constant 0 : i32
    %c0_i32_0 = arith.constant 0 : i32
    return %arg0, %arg1, %c0_i32 : i32, i32, i32
  }
}

</mosaic_0001>

<llo_original>
// kernel: shared_dropout.1
$region0: #{shared_dropout.1}
  #allocation0 [shape = 'u32[]', space=smem, size = 0x4, offset = 0x4, fixed_abs, tag = 'smem constant byte address 0x4 - core index']
  #allocation1 [shape = 'u32[144,128]{1,0:T(1,128)}', space=vmem, size = 0x12000, scoped, tag = 'internal scratch']
  %s0 = inlined_call_operand.vmem [shape: f32[2,8,32], index: 0, kind: input, shape index: {}]
  %s1 = inlined_call_operand.vmem [shape: f32[2,1,32], index: 1, kind: input, shape index: {}]
  %s2 = inlined_call_operand.hbm [shape: f32[2,8,32], index: 2, kind: output, shape index: {}]
  %s3 = sld [smem:[#allocation0]]
  $region41: #{shared_dropout.1} parent=0
    _
  %s5 = ssub.s32 1, %s3
  %s6 = scalar_select 0, %s5, %s3
  $region1: #{shared_dropout.1} parent=0
    #allocation2 [shape = 'u8[8192]{0}', space=vmem, size = 0x2000, scoped, tag = 'output window, operand 0']
    #allocation3 [shape = 's32[2]{0}', space=sflag, size = 0x8, scoped, tag = 'scoped memory for shared_dropout.1']
    %7 = vsyncpa [#allocation3], 0
    %s8 = scalar_lea.sflag [#allocation3], 1
    %9 = vsyncpa %s8, 0
    loop: start=0, step=1, limit=4
    $region2: #{shared_dropout.1} parent=1 // loop_pre_header
      _
    $region3: #{shared_dropout.1} parent=1 // loop_header
      %s11 = sphi 0, %s15
      %p12 = scmp.ge.s32.totalorder %s11, 4
      %s18 = sphi 0, %s30
      %s19 = sphi 0, %s26
      %s20 = sphi 0, %s18
      %s21 = sphi 0, %s19
      %s22 = sphi 0, %s20
      %s23 = sphi 0, %s21
      %s35 = sphi 0, %s37
      %s38 = sphi 0, %s35
      %s39 = sphi 0, %s38
      %s55 = sphi 0, %s39
      %s61 = sphi 0, %s63
      %s64 = sphi 0, %s61
      %s65 = sphi 0, %s64
      %s81 = sphi 0, %s65
      %s89 = sphi 0, %s91
      %s92 = sphi 0, %s89
      %s93 = sphi 0, %s92
      %s109 = sphi 0, %s93
    $region4: #{shared_dropout.1} parent=1 // loop_header_branch
      %14 = sbr.rel (%p12) target = $region8
    $region5: #{shared_dropout.1} parent=1 // loop_body
      %s16 = ssub.s32 %s11, 1
      %s17 = ssub.s32 %s11, 2
      %s24 = sadd.s32 1, %s19
      %p25 = scmp.ge.s32.totalorder %s24, 1
      %s26 = scalar_select %p25, 0, %s24
      %s27 = sadd.s32 1, %s18
      %s28 = scalar_select %p25, %s27, %s18
      %p29 = scmp.ge.s32.totalorder %s28, 2
      %s30 = scalar_select %p29, 0, %s28
      %s31 = ssub.s32 %s18, %s30
      %s32 = ssub.s32 %s19, %s26
      %s33 = sor.u32 %s31, %s32
      %p34 = scmp.eq.s32.totalorder %s33, 0
      %s36 = sadd.s32 %s35, 1
      %s37 = scalar_select %p34, %s35, %s36
      %p40 = pneg %p34
      %p41 = scmp.eq.s32.totalorder %s11, 1
      %p42 = por %p40, %p41
      %p43 = scmp.ne.s32.totalorder %s35, %s38
      %p44 = scmp.eq.s32.totalorder %s11, 0
      %p45 = por %p43, %p44
      %p46 = scmp.ne.s32.totalorder %s35, %s38
      %p47 = scmp.eq.s32.totalorder %s16, 1
      %p48 = por %p46, %p47
      %p49 = scmp.ne.s32.totalorder %s38, %s39
      %p50 = scmp.eq.s32.totalorder %s16, 0
      %p51 = por %p49, %p50
      %p52 = scmp.ne.s32.totalorder %s38, %s39
      %p53 = scmp.eq.s32.totalorder %s17, 1
      %p54 = por %p52, %p53
      %p56 = scmp.ne.s32.totalorder %s39, %s55
      %p57 = scmp.eq.s32.totalorder %s17, 0
      %p58 = por %p56, %p57
      %s59 = ssub.s32 %s18, %s30
      %p60 = scmp.eq.s32.totalorder %s59, 0
      %s62 = sadd.s32 %s61, 1
      %s63 = scalar_select %p60, %s61, %s62
      %p66 = pneg %p60
      %p67 = scmp.eq.s32.totalorder %s11, 1
      %p68 = por %p66, %p67
      %p69 = scmp.ne.s32.totalorder %s61, %s64
      %p70 = scmp.eq.s32.totalorder %s11, 0
      %p71 = por %p69, %p70
      %p72 = scmp.ne.s32.totalorder %s61, %s64
      %p73 = scmp.eq.s32.totalorder %s16, 1
      %p74 = por %p72, %p73
      %p75 = scmp.ne.s32.totalorder %s64, %s65
      %p76 = scmp.eq.s32.totalorder %s16, 0
      %p77 = por %p75, %p76
      %p78 = scmp.ne.s32.totalorder %s64, %s65
      %p79 = scmp.eq.s32.totalorder %s17, 1
      %p80 = por %p78, %p79
      %p82 = scmp.ne.s32.totalorder %s65, %s81
      %p83 = scmp.eq.s32.totalorder %s17, 0
      %p84 = por %p82, %p83
      %s85 = ssub.s32 %s18, %s30
      %s86 = ssub.s32 %s19, %s26
      %s87 = sor.u32 %s85, %s86
      %p88 = scmp.eq.s32.totalorder %s87, 0
      %s90 = sadd.s32 %s89, 1
      %s91 = scalar_select %p88, %s89, %s90
      %p94 = pneg %p88
      %p95 = scmp.eq.s32.totalorder %s11, 1
      %p96 = por %p94, %p95
      %p97 = scmp.ne.s32.totalorder %s89, %s92
      %p98 = scmp.eq.s32.totalorder %s11, 0
      %p99 = por %p97, %p98
      %p100 = scmp.ne.s32.totalorder %s89, %s92
      %p101 = scmp.eq.s32.totalorder %s16, 1
      %p102 = por %p100, %p101
      %p103 = scmp.ne.s32.totalorder %s92, %s93
      %p104 = scmp.eq.s32.totalorder %s16, 0
      %p105 = por %p103, %p104
      %p106 = scmp.ne.s32.totalorder %s92, %s93
      %p107 = scmp.eq.s32.totalorder %s17, 1
      %p108 = por %p106, %p107
      %p110 = scmp.ne.s32.totalorder %s93, %s109
      %p111 = scmp.eq.s32.totalorder %s17, 0
      %p112 = por %p110, %p111
      %p113 = scmp.le.s32.totalorder 1, %s11
      %p114 = scmp.lt.s32.totalorder %s11, 3
      %p115 = pnand %p113, %p114
      %p116 = pneg %p115
      // Predicated region
      $region9: #{shared_dropout.1} parent=5 // pred_check
        _
      $region10: #{shared_dropout.1} parent=5 // pred_check_branch
        %118 = sbr.rel (%p115) target = $region12
      $region11: #{shared_dropout.1} parent=5 // pred_region
        %s119 = ssub.s32 %s11, 1
      $region12: #{shared_dropout.1} parent=5 // pred_fallthru
        _
      %p120 = scmp.lt.s32.totalorder %s11, 2
      // Predicated region
      $region13: #{shared_dropout.1} parent=5 // pred_check
        %p121 = pneg %p120
      $region14: #{shared_dropout.1} parent=5 // pred_check_branch
        %123 = sbr.rel (%p121) target = $region16
      $region15: #{shared_dropout.1} parent=5 // pred_region
        // Predicated region
        $region17: #{shared_dropout.1} parent=15 // pred_check
          %p124 = pneg %p45
        $region18: #{shared_dropout.1} parent=15 // pred_check_branch
          %126 = sbr.rel (%p124) target = $region20
        $region19: #{shared_dropout.1} parent=15 // pred_region
          %p127 = scmp.lt.s32.totalorder %s18, 1
          %s128 = scalar_select %p127, %s18, 1
          %p129 = scmp.lt.s32.totalorder %s19, 0
          %s130 = scalar_select %p129, %s19, 0
          %s131 = sadd.s32 %s130, %s128
          %s132 = smul.addr %s131, 8
          %s133 = scalar_lea.vmem %s0, %s132
        $region20: #{shared_dropout.1} parent=15 // pred_fallthru
          _
        // Predicated region
        $region21: #{shared_dropout.1} parent=15 // pred_check
          %p134 = pneg %p71
        $region22: #{shared_dropout.1} parent=15 // pred_check_branch
          %136 = sbr.rel (%p134) target = $region24
        $region23: #{shared_dropout.1} parent=15 // pred_region
          %p137 = scmp.lt.s32.totalorder %s18, 1
          %s138 = scalar_select %p137, %s18, 1
          %s139 = scalar_lea.vmem %s1, %s138
        $region24: #{shared_dropout.1} parent=15 // pred_fallthru
          _
      $region16: #{shared_dropout.1} parent=5 // pred_fallthru
        _
      %p140 = scmp.le.s32.totalorder 1, %s11
      %p141 = scmp.lt.s32.totalorder %s11, 3
      %p142 = pnand %p140, %p141
      %p143 = pneg %p142
      // Predicated region
      $region25: #{shared_dropout.1} parent=5 // pred_check
        _
      $region26: #{shared_dropout.1} parent=5 // pred_check_branch
        %145 = sbr.rel (%p142) target = $region28
      $region27: #{shared_dropout.1} parent=5 // pred_region
        %s146 = ssub.s32 %s11, 1
        %p147 = scmp.lt.s32.totalorder %s20, 1
        %s148 = scalar_select %p147, %s20, 1
        %p149 = scmp.lt.s32.totalorder %s21, 0
        %s150 = scalar_select %p149, %s21, 0
        %s151 = sadd.s32 %s150, %s148
        %s152 = smul.addr %s151, 8
        %s153 = scalar_lea.vmem %s0, %s152
        %p154 = pneg %p51
        %p155 = pneg %p48
        %p156 = scmp.lt.s32.totalorder %s20, 1
        %s157 = scalar_select %p156, %s20, 1
        %s158 = scalar_lea.vmem %s1, %s157
        %p159 = pneg %p77
        %p160 = pneg %p74
        %p161 = pneg %p105
        %p162 = pneg %p102
        %s163 = sand.u32 %s92, 1
        %s164 = scalar_lea.sflag [#allocation3], %s163
        %s165 = sand.u32 %s92, 1
        %s166 = smul.addr %s165, 8
        %s167 = scalar_lea.vmem [#allocation2], %s166
        %p168 = scmp.lt.s32.totalorder %s20, 1
        %s169 = scalar_select %p168, %s20, 1
        %p170 = scmp.lt.s32.totalorder %s21, 0
        %s171 = scalar_select %p170, %s21, 0
        %s172 = sadd.s32 %s171, %s169
        %s173 = smul.addr %s172, 8
        %s174 = scalar_lea.vmem %s0, %s173
        %p175 = scmp.lt.s32.totalorder %s20, 1
        %s176 = scalar_select %p175, %s20, 1
        %s177 = scalar_lea.vmem %s1, %s176
        %v178 = vld [vmem:[%s174] sm:$0xff]
        %v179 = vld [vmem:[%s177] sm:$0x1]
        %v181 = vlaneseq
        %v182 = vshrl.u32 %v181, 7
        %v183 = vsub.s32 0, %v182
        %v184 = vrot.slane %v179, %v183
        %v186 = vmul.f32 %v178, %v184
        %vm187 = vcmask 261120
        %188 = vst.msk [vmem:[%s167] sm:$0xff] %vm187, %v186
        %s189 = sand.u32 %s92, 1
        %s190 = scalar_lea.sflag [#allocation3], %s189
        %s191 = sand.u32 %s92, 1
        %s192 = smul.addr %s191, 8
        %s193 = scalar_lea.vmem [#allocation2], %s192
        // Predicated region
        $region29: #{shared_dropout.1} parent=27 // pred_check
          %p194 = pneg %p102
        $region30: #{shared_dropout.1} parent=27 // pred_check_branch
          %196 = sbr.rel (%p194) target = $region32
        $region31: #{shared_dropout.1} parent=27 // pred_region
          %s198 = ssub.s32 128, 128
          %199 = vsyncadd %s190, %s198
          %s200 = sadd.s32 %s21, %s20
          %s201 = smul.addr %s200, 128
          %s202 = scalar_lea.hbm %s2, %s201
          %s204 = sshll.u32 %s193, 4
          %s205 = int_to_ptr.vmem [resolvable:$true] %s204
          %207 = dma.vmem_to_hbm [thread:$0]  %s205, 128, %s202, %s190
        $region32: #{shared_dropout.1} parent=27 // pred_fallthru
          _
      $region28: #{shared_dropout.1} parent=5 // pred_fallthru
        _
      %p208 = scmp.le.s32.totalorder 2, %s11
      // Predicated region
      $region33: #{shared_dropout.1} parent=5 // pred_check
        %p209 = pneg %p208
      $region34: #{shared_dropout.1} parent=5 // pred_check_branch
        %211 = sbr.rel (%p209) target = $region36
      $region35: #{shared_dropout.1} parent=5 // pred_region
        %s212 = ssub.s32 %s11, 2
        // Predicated region
        $region37: #{shared_dropout.1} parent=35 // pred_check
          %p213 = pneg %p108
        $region38: #{shared_dropout.1} parent=35 // pred_check_branch
          %215 = sbr.rel (%p213) target = $region40
        $region39: #{shared_dropout.1} parent=35 // pred_region
          %s216 = sand.u32 %s93, 1
          %s217 = scalar_lea.sflag [#allocation3], %s216
          %s218 = sand.u32 %s93, 1
          %s219 = smul.addr %s218, 8
          %s220 = scalar_lea.vmem [#allocation2], %s219
          %221 = dma.done %s217, 128
        $region40: #{shared_dropout.1} parent=35 // pred_fallthru
          _
      $region36: #{shared_dropout.1} parent=5 // pred_fallthru
        _
    $region6: #{shared_dropout.1} parent=1 // loop_footer
      %s15 = sadd.s32 1, %s11
    $region7: #{shared_dropout.1} parent=1 // loop_footer_branch
      %10 = sbr.rel target = $region3
    $region8: #{shared_dropout.1} parent=1 // loop_exit
      _
    %222 = vsyncpa [#allocation3], 1
    %s223 = scalar_lea.sflag [#allocation3], 1
    %224 = vsyncpa %s223, 1

</llo_original>
